<compile_context>
chip_gen: v6e
topology: v6e:2x2x1
jax: 0.10.0
libtpu: 0.0.40
codegen_flags: <defaults>
</compile_context>

<pallas_src>
import functools

import jax
import jax.numpy as jnp
from jax import lax
from jax.experimental import pallas as pl
from jax.experimental.pallas import tpu as pltpu

EPS = 1e-5  # nn.GroupNorm default eps


def _cdiv(a, b):
    return -(-a // b)


def _round_up(a, b):
    return _cdiv(a, b) * b


def block1d_kernel(x_ref, gamma_ref, beta_ref, o_ref, *, inv_count):
    # x_ref:     (RB, 1, Cg, L)  RB samples of one group (natural NCL view)
    # gamma_ref: (1, 1, Cg, 1)   per-channel scale for this group (f32)
    # beta_ref:  (1, 1, Cg, 1)   per-channel shift for this group (f32)
    # o_ref:     (RB, 1, Cg, L)
    xf = x_ref[...].astype(jnp.float32)

    # GroupNorm statistics, two-pass for numerical robustness (second pass is
    # VMEM/register-only; no extra HBM traffic).  Biased variance == PyTorch.
    row_sum = jnp.sum(jnp.sum(xf, axis=3, keepdims=True), axis=2, keepdims=True)
    mean = row_sum * inv_count                                   # (RB,1,1,1)
    d = xf - mean
    sq_sum = jnp.sum(jnp.sum(d * d, axis=3, keepdims=True), axis=2, keepdims=True)
    var = sq_sum * inv_count
    inv = lax.rsqrt(var + EPS)                                   # (RB,1,1,1)

    # Normalize + per-channel affine (GroupNorm weight/bias), then ReLU.
    scale = inv * gamma_ref[...]                                 # (RB,1,Cg,1)
    y = d * scale + beta_ref[...]
    y = jnp.maximum(y, 0.0)

    # TODO(synk): nn.Dropout(0.1) is identity in eval mode; training-mode
    # stochastic masking (pltpu.prng_seed/prng_random_bits) is not implemented.
    o_ref[...] = y.astype(o_ref.dtype)


def block1d_forward(x, gamma, beta, num_groups, *,
                    target_block_bytes=2 << 20,
                    vmem_limit_bytes=32 * 1024 * 1024):
    """GroupNorm(num_groups) + ReLU (+ Dropout as identity) on NCL input."""
    n, c, l = x.shape
    g = num_groups
    assert c % g == 0
    cg = c // g

    # Free views only: (N, C, L) -> (N, G, Cg, L) is a split-reshape (same
    # linear element order), so no HBM copy is materialized around the kernel.
    xg = x.reshape(n, g, cg, l)
    gamma4 = gamma.reshape(g, 1, cg, 1).astype(jnp.float32)
    beta4 = beta.reshape(g, 1, cg, 1).astype(jnp.float32)

    # Row-block sizing: budget rows by the VMEM-layout-padded fp32 footprint of
    # one (Cg, L) row tile so in-kernel temporaries fit, then split N into
    # near-equal blocks (tail waste <= n_blocks - 1 phantom rows, never padded
    # in HBM — Pallas clips the partial last block).
    padded_row_f32 = _round_up(cg, 8) * _round_up(l, 128) * 4
    rb_max = max(1, target_block_bytes // padded_row_f32)
    n_blocks = _cdiv(n, rb_max)
    # v7x megacore load balance: guarantee >= 2 grid steps when G == 1.
    if g * n_blocks < 2 and n >= 2:
        n_blocks = 2
    rb = _cdiv(n, n_blocks)
    # TODO(synk): if a single row (Cg*L) alone overflows the VMEM budget, the
    # channel/length axes would additionally need an accumulator ('arbitrary')
    # grid axis; not needed at these sizes.

    kernel = functools.partial(block1d_kernel, inv_count=1.0 / float(cg * l))

    out = pl.pallas_call(
        kernel,
        out_shape=jax.ShapeDtypeStruct((n, g, cg, l), x.dtype),
        grid=(g, n_blocks),  # group outermost -> gamma/beta blocks stay resident
        in_specs=[
            pl.BlockSpec((rb, 1, cg, l), lambda gi, ri: (ri, gi, 0, 0)),
            pl.BlockSpec((1, 1, cg, 1), lambda gi, ri: (gi, 0, 0, 0)),
            pl.BlockSpec((1, 1, cg, 1), lambda gi, ri: (gi, 0, 0, 0)),
        ],
        out_specs=pl.BlockSpec((rb, 1, cg, l), lambda gi, ri: (ri, gi, 0, 0)),
        compiler_params=pltpu.CompilerParams(
            dimension_semantics=("parallel", "parallel"),
            vmem_limit_bytes=vmem_limit_bytes),
    )(xg, gamma4, beta4)

    # Free merge back to NCL layout.
    return out.reshape(n, c, l)


def block1d_reference(x, gamma, beta, num_groups):
    """Pure-JAX reference matching PyTorch GroupNorm + ReLU (eval mode)."""
    n, c, l = x.shape
    g = num_groups
    cg = c // g
    xg = x.reshape(n, g, cg, l).astype(jnp.float32)
    mean = jnp.mean(xg, axis=(2, 3), keepdims=True)
    var = jnp.mean((xg - mean) ** 2, axis=(2, 3), keepdims=True)
    xn = (xg - mean) * lax.rsqrt(var + EPS)
    y = xn * gamma.reshape(1, g, cg, 1).astype(jnp.float32) \
        + beta.reshape(1, g, cg, 1).astype(jnp.float32)
    y = jnp.maximum(y, 0.0)
    return y.reshape(n, c, l).astype(x.dtype)


def _run_case(key, n, c, l, groups, dtype, atol, rtol):
    kx, kg, kb = jax.random.split(key, 3)
    x = jax.random.normal(kx, (n, c, l), dtype=jnp.float32).astype(dtype)
    gamma = 1.0 + 0.1 * jax.random.normal(kg, (c,), dtype=jnp.float32)
    beta = 0.1 * jax.random.normal(kb, (c,), dtype=jnp.float32)

    out = block1d_forward(x, gamma, beta, groups)
    out = jax.block_until_ready(out)
    ref = block1d_reference(x, gamma, beta, groups)

    assert out.shape == (n, c, l)
    assert out.dtype == x.dtype
    assert jnp.allclose(out.astype(jnp.float32), ref.astype(jnp.float32),
                        atol=atol, rtol=rtol), "mismatch vs reference"


if __name__ == "__main__":
    key = jax.random.PRNGKey(0)
    k0, k1, k2, k3 = jax.random.split(key, 4)

    # Small base case: (batch, channels, length) = (2, 4, 16), 2 groups.
    _run_case(k0, n=2, c=4, l=16, groups=2, dtype=jnp.float32,
              atol=1e-4, rtol=1e-4)
    # Length not a multiple of 128 and odd batch (layout handled in VMEM only).
    _run_case(k1, n=3, c=8, l=100, groups=4, dtype=jnp.float32,
              atol=1e-4, rtol=1e-4)
    # bf16 I/O, fp32 compute inside the kernel.
    _run_case(k2, n=2, c=4, l=16, groups=2, dtype=jnp.bfloat16,
              atol=2e-2, rtol=2e-2)
    # Single group: exercises megacore row split + clipped partial row block.
    _run_case(k3, n=5, c=6, l=24, groups=1, dtype=jnp.float32,
              atol=1e-4, rtol=1e-4)

    print("KERNEL_OK")
</pallas_src>

<mosaic_0001>
module attributes {stable_mosaic.version = 11 : i64} {
  func.func @block1d_kernel(%arg0: i32, %arg1: i32, %arg2: memref<2x1x2x16xf32, #tpu.memory_space<vmem>>, %arg3: memref<1x1x2x1xf32, #tpu.memory_space<vmem>>, %arg4: memref<1x1x2x1xf32, #tpu.memory_space<vmem>>, %arg5: memref<2x1x2x16xf32, #tpu.memory_space<vmem>>) attributes {dimension_semantics = [#tpu.dimension_semantics<parallel>, #tpu.dimension_semantics<parallel>], iteration_bounds = array<i64: 2, 1>, scalar_prefetch = 0 : i64, scratch_operands = 0 : i64, tpu.core_type = #tpu.core_type<tc>, window_params = [{transform_indices = @transform_0, window_bounds = array<i64: 2, 1, 2, 16>}, {transform_indices = @transform_1, window_bounds = array<i64: 1, 1, 2, 1>}, {transform_indices = @transform_2, window_bounds = array<i64: 1, 1, 2, 1>}, {transform_indices = @transform_3, window_bounds = array<i64: 2, 1, 2, 16>}]} {
    %c0 = arith.constant 0 : index
    %c0_0 = arith.constant 0 : index
    %c0_1 = arith.constant 0 : index
    %c0_2 = arith.constant 0 : index
    %0 = vector.load %arg2[%c0, %c0_0, %c0_1, %c0_2] : memref<2x1x2x16xf32, #tpu.memory_space<vmem>>, vector<2x1x2x16xf32>
    %cst = arith.constant dense<0.000000e+00> : vector<2x1x2xf32>
    %1 = vector.multi_reduction <add>, %0, %cst [3] : vector<2x1x2x16xf32> to vector<2x1x2xf32>
    %2 = vector.shape_cast %1 : vector<2x1x2xf32> to vector<2x1x2x1xf32>
    %cst_3 = arith.constant dense<0.000000e+00> : vector<2x1x1xf32>
    %3 = vector.multi_reduction <add>, %2, %cst_3 [2] : vector<2x1x2x1xf32> to vector<2x1x1xf32>
    %4 = vector.shape_cast %3 : vector<2x1x1xf32> to vector<2x1x1x1xf32>
    %cst_4 = arith.constant 3.125000e-02 : f32
    %5 = vector.broadcast %cst_4 : f32 to vector<2x1x1x1xf32>
    %6 = arith.mulf %4, %5 : vector<2x1x1x1xf32>
    %7 = vector.broadcast %6 : vector<2x1x1x1xf32> to vector<2x1x2x16xf32>
    %8 = arith.subf %0, %7 : vector<2x1x2x16xf32>
    %9 = arith.mulf %8, %8 : vector<2x1x2x16xf32>
    %cst_5 = arith.constant dense<0.000000e+00> : vector<2x1x2xf32>
    %10 = vector.multi_reduction <add>, %9, %cst_5 [3] : vector<2x1x2x16xf32> to vector<2x1x2xf32>
    %11 = vector.shape_cast %10 : vector<2x1x2xf32> to vector<2x1x2x1xf32>
    %cst_6 = arith.constant dense<0.000000e+00> : vector<2x1x1xf32>
    %12 = vector.multi_reduction <add>, %11, %cst_6 [2] : vector<2x1x2x1xf32> to vector<2x1x1xf32>
    %13 = vector.shape_cast %12 : vector<2x1x1xf32> to vector<2x1x1x1xf32>
    %cst_7 = arith.constant 3.125000e-02 : f32
    %14 = vector.broadcast %cst_7 : f32 to vector<2x1x1x1xf32>
    %15 = arith.mulf %13, %14 : vector<2x1x1x1xf32>
    %cst_8 = arith.constant 9.99999974E-6 : f32
    %16 = vector.broadcast %cst_8 : f32 to vector<2x1x1x1xf32>
    %17 = arith.addf %15, %16 : vector<2x1x1x1xf32>
    %18 = math.rsqrt %17 : vector<2x1x1x1xf32>
    %c0_9 = arith.constant 0 : index
    %c0_10 = arith.constant 0 : index
    %c0_11 = arith.constant 0 : index
    %c0_12 = arith.constant 0 : index
    %19 = vector.load %arg3[%c0_9, %c0_10, %c0_11, %c0_12] : memref<1x1x2x1xf32, #tpu.memory_space<vmem>>, vector<1x1x2x1xf32>
    %20 = vector.broadcast %18 : vector<2x1x1x1xf32> to vector<2x1x2x1xf32>
    %21 = vector.broadcast %19 : vector<1x1x2x1xf32> to vector<2x1x2x1xf32>
    %22 = arith.mulf %20, %21 : vector<2x1x2x1xf32>
    %23 = vector.broadcast %22 : vector<2x1x2x1xf32> to vector<2x1x2x16xf32>
    %24 = arith.mulf %8, %23 : vector<2x1x2x16xf32>
    %c0_13 = arith.constant 0 : index
    %c0_14 = arith.constant 0 : index
    %c0_15 = arith.constant 0 : index
    %c0_16 = arith.constant 0 : index
    %25 = vector.load %arg4[%c0_13, %c0_14, %c0_15, %c0_16] : memref<1x1x2x1xf32, #tpu.memory_space<vmem>>, vector<1x1x2x1xf32>
    %26 = vector.broadcast %25 : vector<1x1x2x1xf32> to vector<2x1x2x16xf32>
    %27 = arith.addf %24, %26 : vector<2x1x2x16xf32>
    %cst_17 = arith.constant 0.000000e+00 : f32
    %28 = vector.broadcast %cst_17 : f32 to vector<2x1x2x16xf32>
    %29 = arith.maximumf %27, %28 : vector<2x1x2x16xf32>
    %c0_18 = arith.constant 0 : index
    %c0_19 = arith.constant 0 : index
    %c0_20 = arith.constant 0 : index
    %c0_21 = arith.constant 0 : index
    %30 = vector.load %arg5[%c0_18, %c0_19, %c0_20, %c0_21] : memref<2x1x2x16xf32, #tpu.memory_space<vmem>>, vector<2x1x2x16xf32>
    tpu.vector_store %arg5[%c0_18, %c0_19, %c0_20, %c0_21], %29 {strides = array<i32>} : memref<2x1x2x16xf32, #tpu.memory_space<vmem>>, vector<2x1x2x16xf32>,
    return
  }
  func.func @transform_0(%arg0: i32, %arg1: i32) -> (i32, i32, i32, i32) {
    %c0_i32 = arith.constant 0 : i32
    %c0_i32_0 = arith.constant 0 : i32
    %c0_i32_1 = arith.constant 0 : i32
    return %arg1, %arg0, %c0_i32, %c0_i32_0 : i32, i32, i32, i32
  }
  func.func @transform_1(%arg0: i32, %arg1: i32) -> (i32, i32, i32, i32) {
    %c0_i32 = arith.constant 0 : i32
    %c0_i32_0 = arith.constant 0 : i32
    %c0_i32_1 = arith.constant 0 : i32
    %c0_i32_2 = arith.constant 0 : i32
    return %arg0, %c0_i32, %c0_i32_0, %c0_i32_1 : i32, i32, i32, i32
  }
  func.func @transform_2(%arg0: i32, %arg1: i32) -> (i32, i32, i32, i32) {
    %c0_i32 = arith.constant 0 : i32
    %c0_i32_0 = arith.constant 0 : i32
    %c0_i32_1 = arith.constant 0 : i32
    %c0_i32_2 = arith.constant 0 : i32
    return %arg0, %c0_i32, %c0_i32_0, %c0_i32_1 : i32, i32, i32, i32
  }
  func.func @transform_3(%arg0: i32, %arg1: i32) -> (i32, i32, i32, i32) {
    %c0_i32 = arith.constant 0 : i32
    %c0_i32_0 = arith.constant 0 : i32
    %c0_i32_1 = arith.constant 0 : i32
    return %arg1, %arg0, %c0_i32, %c0_i32_0 : i32, i32, i32, i32
  }
}

</mosaic_0001>

<llo_original>
// kernel: tpu_custom_call.1
$region0: #{tpu_custom_call.1}
  #allocation0 [shape = 'u32[]', space=smem, size = 0x4, offset = 0x4, fixed_abs, tag = 'smem constant byte address 0x4 - core index']
  #allocation1 [shape = 'u32[144,128]{1,0:T(1,128)}', space=vmem, size = 0x12000, scoped, tag = 'internal scratch']
  %s0 = inlined_call_operand.vmem [shape: f32[2,2,2,16], index: 0, kind: input, shape index: {}]
  %s1 = inlined_call_operand.vmem [shape: f32[2,1,2,1], index: 1, kind: input, shape index: {}]
  %s2 = inlined_call_operand.vmem [shape: f32[2,1,2,1], index: 2, kind: input, shape index: {}]
  %s3 = inlined_call_operand.hbm [shape: f32[2,2,2,16], index: 3, kind: output, shape index: {}]
  %s4 = sld [smem:[#allocation0]]
  $region79: #{tpu_custom_call.1} parent=0
    _
  %s6 = ssub.s32 1, %s4
  %s7 = scalar_select 0, %s6, %s4
  $region1: #{tpu_custom_call.1} parent=0
    #allocation2 [shape = 'u8[4096]{0}', space=vmem, size = 0x1000, scoped, tag = 'input window, operand 0']
    #allocation3 [shape = 'u8[4096]{0}', space=vmem, size = 0x1000, scoped, tag = 'output window, operand 0']
    #allocation4 [shape = 's32[2]{0}', space=sflag, size = 0x8, scoped, tag = 'scoped memory for tpu_custom_call.1']
    %8 = vsyncpa [#allocation4], 0
    %s9 = scalar_lea.sflag [#allocation4], 1
    %10 = vsyncpa %s9, 0
    loop: start=0, step=1, limit=4
    $region2: #{tpu_custom_call.1} parent=1 // loop_pre_header
      _
    $region3: #{tpu_custom_call.1} parent=1 // loop_header
      %s12 = sphi 0, %s16
      %p13 = scmp.ge.s32.totalorder %s12, 4
      %s19 = sphi 0, %s31
      %s20 = sphi 0, %s27
      %s21 = sphi 0, %s19
      %s22 = sphi 0, %s20
      %s23 = sphi 0, %s21
      %s24 = sphi 0, %s22
      %s36 = sphi 0, %s38
      %s39 = sphi 0, %s36
      %s40 = sphi 0, %s39
      %s56 = sphi 0, %s40
      %s62 = sphi 0, %s64
      %s65 = sphi 0, %s62
      %s66 = sphi 0, %s65
      %s82 = sphi 0, %s66
      %s88 = sphi 0, %s90
      %s91 = sphi 0, %s88
      %s92 = sphi 0, %s91
      %s108 = sphi 0, %s92
      %s116 = sphi 0, %s118
      %s119 = sphi 0, %s116
      %s120 = sphi 0, %s119
      %s136 = sphi 0, %s120
    $region4: #{tpu_custom_call.1} parent=1 // loop_header_branch
      %15 = sbr.rel (%p13) target = $region8
    $region5: #{tpu_custom_call.1} parent=1 // loop_body
      %s17 = ssub.s32 %s12, 1
      %s18 = ssub.s32 %s12, 2
      %s25 = sadd.s32 1, %s20
      %p26 = scmp.ge.s32.totalorder %s25, 1
      %s27 = scalar_select %p26, 0, %s25
      %s28 = sadd.s32 1, %s19
      %s29 = scalar_select %p26, %s28, %s19
      %p30 = scmp.ge.s32.totalorder %s29, 2
      %s31 = scalar_select %p30, 0, %s29
      %s32 = ssub.s32 %s20, %s27
      %s33 = ssub.s32 %s19, %s31
      %s34 = sor.u32 %s32, %s33
      %p35 = scmp.eq.s32.totalorder %s34, 0
      %s37 = sadd.s32 %s36, 1
      %s38 = scalar_select %p35, %s36, %s37
      %p41 = pneg %p35
      %p42 = scmp.eq.s32.totalorder %s12, 1
      %p43 = por %p41, %p42
      %p44 = scmp.ne.s32.totalorder %s36, %s39
      %p45 = scmp.eq.s32.totalorder %s12, 0
      %p46 = por %p44, %p45
      %p47 = scmp.ne.s32.totalorder %s36, %s39
      %p48 = scmp.eq.s32.totalorder %s17, 1
      %p49 = por %p47, %p48
      %p50 = scmp.ne.s32.totalorder %s39, %s40
      %p51 = scmp.eq.s32.totalorder %s17, 0
      %p52 = por %p50, %p51
      %p53 = scmp.ne.s32.totalorder %s39, %s40
      %p54 = scmp.eq.s32.totalorder %s18, 1
      %p55 = por %p53, %p54
      %p57 = scmp.ne.s32.totalorder %s40, %s56
      %p58 = scmp.eq.s32.totalorder %s18, 0
      %p59 = por %p57, %p58
      %s60 = ssub.s32 %s19, %s31
      %p61 = scmp.eq.s32.totalorder %s60, 0
      %s63 = sadd.s32 %s62, 1
      %s64 = scalar_select %p61, %s62, %s63
      %p67 = pneg %p61
      %p68 = scmp.eq.s32.totalorder %s12, 1
      %p69 = por %p67, %p68
      %p70 = scmp.ne.s32.totalorder %s62, %s65
      %p71 = scmp.eq.s32.totalorder %s12, 0
      %p72 = por %p70, %p71
      %p73 = scmp.ne.s32.totalorder %s62, %s65
      %p74 = scmp.eq.s32.totalorder %s17, 1
      %p75 = por %p73, %p74
      %p76 = scmp.ne.s32.totalorder %s65, %s66
      %p77 = scmp.eq.s32.totalorder %s17, 0
      %p78 = por %p76, %p77
      %p79 = scmp.ne.s32.totalorder %s65, %s66
      %p80 = scmp.eq.s32.totalorder %s18, 1
      %p81 = por %p79, %p80
      %p83 = scmp.ne.s32.totalorder %s66, %s82
      %p84 = scmp.eq.s32.totalorder %s18, 0
      %p85 = por %p83, %p84
      %s86 = ssub.s32 %s19, %s31
      %p87 = scmp.eq.s32.totalorder %s86, 0
      %s89 = sadd.s32 %s88, 1
      %s90 = scalar_select %p87, %s88, %s89
      %p93 = pneg %p87
      %p94 = scmp.eq.s32.totalorder %s12, 1
      %p95 = por %p93, %p94
      %p96 = scmp.ne.s32.totalorder %s88, %s91
      %p97 = scmp.eq.s32.totalorder %s12, 0
      %p98 = por %p96, %p97
      %p99 = scmp.ne.s32.totalorder %s88, %s91
      %p100 = scmp.eq.s32.totalorder %s17, 1
      %p101 = por %p99, %p100
      %p102 = scmp.ne.s32.totalorder %s91, %s92
      %p103 = scmp.eq.s32.totalorder %s17, 0
      %p104 = por %p102, %p103
      %p105 = scmp.ne.s32.totalorder %s91, %s92
      %p106 = scmp.eq.s32.totalorder %s18, 1
      %p107 = por %p105, %p106
      %p109 = scmp.ne.s32.totalorder %s92, %s108
      %p110 = scmp.eq.s32.totalorder %s18, 0
      %p111 = por %p109, %p110
      %s112 = ssub.s32 %s20, %s27
      %s113 = ssub.s32 %s19, %s31
      %s114 = sor.u32 %s112, %s113
      %p115 = scmp.eq.s32.totalorder %s114, 0
      %s117 = sadd.s32 %s116, 1
      %s118 = scalar_select %p115, %s116, %s117
      %p121 = pneg %p115
      %p122 = scmp.eq.s32.totalorder %s12, 1
      %p123 = por %p121, %p122
      %p124 = scmp.ne.s32.totalorder %s116, %s119
      %p125 = scmp.eq.s32.totalorder %s12, 0
      %p126 = por %p124, %p125
      %p127 = scmp.ne.s32.totalorder %s116, %s119
      %p128 = scmp.eq.s32.totalorder %s17, 1
      %p129 = por %p127, %p128
      %p130 = scmp.ne.s32.totalorder %s119, %s120
      %p131 = scmp.eq.s32.totalorder %s17, 0
      %p132 = por %p130, %p131
      %p133 = scmp.ne.s32.totalorder %s119, %s120
      %p134 = scmp.eq.s32.totalorder %s18, 1
      %p135 = por %p133, %p134
      %p137 = scmp.ne.s32.totalorder %s120, %s136
      %p138 = scmp.eq.s32.totalorder %s18, 0
      %p139 = por %p137, %p138
      %p140 = scmp.le.s32.totalorder 1, %s12
      %p141 = scmp.lt.s32.totalorder %s12, 3
      %p142 = pnand %p140, %p141
      %p143 = pneg %p142
      // Predicated region
      $region9: #{tpu_custom_call.1} parent=5 // pred_check
        _
      $region10: #{tpu_custom_call.1} parent=5 // pred_check_branch
        %145 = sbr.rel (%p142) target = $region12
      $region11: #{tpu_custom_call.1} parent=5 // pred_region
        %s146 = ssub.s32 %s12, 1
      $region12: #{tpu_custom_call.1} parent=5 // pred_fallthru
        _
      %p147 = scmp.lt.s32.totalorder %s12, 2
      // Predicated region
      $region13: #{tpu_custom_call.1} parent=5 // pred_check
        %p148 = pneg %p147
      $region14: #{tpu_custom_call.1} parent=5 // pred_check_branch
        %150 = sbr.rel (%p148) target = $region16
      $region15: #{tpu_custom_call.1} parent=5 // pred_region
        // Predicated region
        $region17: #{tpu_custom_call.1} parent=15 // pred_check
          %p151 = pneg %p46
        $region18: #{tpu_custom_call.1} parent=15 // pred_check_branch
          %153 = sbr.rel (%p151) target = $region20
        $region19: #{tpu_custom_call.1} parent=15 // pred_region
          %s154 = sand.u32 %s36, 1
          %s155 = sand.u32 %s36, 1
          %s156 = smul.addr %s155, 4
          %s157 = scalar_lea.vmem [#allocation2], %s156
          %s158 = smul.u32 2, %s20
          %s159 = smul.addr %s158, 2
          %s160 = sadd.s32 %s19, %s159
          %s161 = smul.addr %s160, 2
          %s162 = scalar_lea.vmem %s0, %s161
          // Predicated region
          $region21: #{tpu_custom_call.1} parent=19 // pred_check
            _
          $region22: #{tpu_custom_call.1} parent=19 // pred_check_branch
            %164 = sbr.rel (0) target = $region24
          $region23: #{tpu_custom_call.1} parent=19 // pred_region
            // Predicated region
            $region25: #{tpu_custom_call.1} parent=23 // pred_check
              _
            $region26: #{tpu_custom_call.1} parent=23 // pred_check_branch
              %166 = sbr.rel target = $region28
            $region27: #{tpu_custom_call.1} parent=23 // pred_region
              // Predicated region
              $region40: #{tpu_custom_call.1} parent=27 // pred_check
                _
              $region41: #{tpu_custom_call.1} parent=27 // pred_check_branch
                %184 = sbr.rel (0) target = $region43
              $region42: #{tpu_custom_call.1} parent=27 // pred_region
                %s186 = ssub.s32 4, 1
                loop: start=0, step=1, limit=1
                $region44: #{tpu_custom_call.1} parent=42 // loop_pre_header
                  _
                $region45: #{tpu_custom_call.1} parent=42 // loop_header
                  %s188 = sphi 0, %s192
                  %p189 = scmp.ge.s32.totalorder %s188, 1
                  %s193 = sphi %s162, %s162
                  %s194 = sphi %s157, %s157
                $region46: #{tpu_custom_call.1} parent=42 // loop_header_branch
                  %191 = sbr.rel (%p189) target = $region50
                $region47: #{tpu_custom_call.1} parent=42 // loop_body
                  %v195 = vld [vmem:[%s193] sm:%s186]
                  %196 = vst [vmem:[%s194] sm:%s186] %v195
                  %v197 = vld [vmem:[%s193 + $0x4] sm:%s186]
                  %198 = vst [vmem:[%s194 + $0x2] sm:%s186] %v197
                $region48: #{tpu_custom_call.1} parent=42 // loop_footer
                  %s192 = sadd.s32 1, %s188
                $region49: #{tpu_custom_call.1} parent=42 // loop_footer_branch
                  %187 = sbr.rel target = $region45
                $region50: #{tpu_custom_call.1} parent=42 // loop_exit
                  _
              $region43: #{tpu_custom_call.1} parent=27 // pred_fallthru
                _
            $region28: #{tpu_custom_call.1} parent=23 // pred_fallthru
              _
            // Predicated region
            $region29: #{tpu_custom_call.1} parent=23 // pred_check
              _
            $region30: #{tpu_custom_call.1} parent=23 // pred_check_branch
              %168 = sbr.rel (0) target = $region32
            $region31: #{tpu_custom_call.1} parent=23 // pred_region
              %s170 = ssub.s32 4, 1
              loop: start=0, step=1, limit=1
              $region33: #{tpu_custom_call.1} parent=31 // loop_pre_header
                _
              $region34: #{tpu_custom_call.1} parent=31 // loop_header
                %s172 = sphi 0, %s176
                %p173 = scmp.ge.s32.totalorder %s172, 1
                %s177 = sphi %s162, %s162
                %s178 = sphi %s157, %s157
              $region35: #{tpu_custom_call.1} parent=31 // loop_header_branch
                %175 = sbr.rel (%p173) target = $region39
              $region36: #{tpu_custom_call.1} parent=31 // loop_body
                %v179 = vld [vmem:[%s177] sm:%s170]
                %180 = vst [vmem:[%s178] sm:%s170] %v179
                %v181 = vld [vmem:[%s177 + $0x4] sm:%s170]
                %182 = vst [vmem:[%s178 + $0x2] sm:%s170] %v181
              $region37: #{tpu_custom_call.1} parent=31 // loop_footer
                %s176 = sadd.s32 1, %s172
              $region38: #{tpu_custom_call.1} parent=31 // loop_footer_branch
                %171 = sbr.rel target = $region34
              $region39: #{tpu_custom_call.1} parent=31 // loop_exit
                _
            $region32: #{tpu_custom_call.1} parent=23 // pred_fallthru
              _
          $region24: #{tpu_custom_call.1} parent=19 // pred_fallthru
            _
          %199 = vnop
        $region20: #{tpu_custom_call.1} parent=15 // pred_fallthru
          _
        // Predicated region
        $region51: #{tpu_custom_call.1} parent=15 // pred_check
          %p200 = pneg %p72
        $region52: #{tpu_custom_call.1} parent=15 // pred_check_branch
          %202 = sbr.rel (%p200) target = $region54
        $region53: #{tpu_custom_call.1} parent=15 // pred_region
          %p203 = scmp.lt.s32.totalorder %s19, 1
          %s204 = scalar_select %p203, %s19, 1
          %s205 = smul.addr %s204, 2
          %s206 = scalar_lea.vmem %s1, %s205
        $region54: #{tpu_custom_call.1} parent=15 // pred_fallthru
          _
        // Predicated region
        $region55: #{tpu_custom_call.1} parent=15 // pred_check
          %p207 = pneg %p98
        $region56: #{tpu_custom_call.1} parent=15 // pred_check_branch
          %209 = sbr.rel (%p207) target = $region58
        $region57: #{tpu_custom_call.1} parent=15 // pred_region
          %p210 = scmp.lt.s32.totalorder %s19, 1
          %s211 = scalar_select %p210, %s19, 1
          %s212 = smul.addr %s211, 2
          %s213 = scalar_lea.vmem %s2, %s212
        $region58: #{tpu_custom_call.1} parent=15 // pred_fallthru
          _
      $region16: #{tpu_custom_call.1} parent=5 // pred_fallthru
        _
      %p214 = scmp.le.s32.totalorder 1, %s12
      %p215 = scmp.lt.s32.totalorder %s12, 3
      %p216 = pnand %p214, %p215
      %p217 = pneg %p216
      // Predicated region
      $region59: #{tpu_custom_call.1} parent=5 // pred_check
        _
      $region60: #{tpu_custom_call.1} parent=5 // pred_check_branch
        %219 = sbr.rel (%p216) target = $region62
      $region61: #{tpu_custom_call.1} parent=5 // pred_region
        %s220 = ssub.s32 %s12, 1
        %s221 = sand.u32 %s39, 1
        %s222 = sand.u32 %s39, 1
        %s223 = smul.addr %s222, 4
        %s224 = scalar_lea.vmem [#allocation2], %s223
        // Predicated region
        $region63: #{tpu_custom_call.1} parent=61 // pred_check
          %p225 = pneg %p52
        $region64: #{tpu_custom_call.1} parent=61 // pred_check_branch
          %227 = sbr.rel (%p225) target = $region66
        $region65: #{tpu_custom_call.1} parent=61 // pred_region
          _
        $region66: #{tpu_custom_call.1} parent=61 // pred_fallthru
          _
        %s228 = sand.u32 %s39, 1
        %s229 = sand.u32 %s39, 1
        %s230 = smul.addr %s229, 4
        %s231 = scalar_lea.vmem [#allocation2], %s230
        %p232 = pneg %p52
        %p233 = pneg %p49
        %p234 = scmp.lt.s32.totalorder %s21, 1
        %s235 = scalar_select %p234, %s21, 1
        %s236 = smul.addr %s235, 2
        %s237 = scalar_lea.vmem %s1, %s236
        %p238 = pneg %p78
        %p239 = pneg %p75
        %p240 = scmp.lt.s32.totalorder %s21, 1
        %s241 = scalar_select %p240, %s21, 1
        %s242 = smul.addr %s241, 2
        %s243 = scalar_lea.vmem %s2, %s242
        %p244 = pneg %p104
        %p245 = pneg %p101
        %p246 = pneg %p132
        %p247 = pneg %p129
        %s248 = sand.u32 %s119, 1
        %s249 = scalar_lea.sflag [#allocation4], %s248
        %s250 = sand.u32 %s119, 1
        %s251 = smul.addr %s250, 4
        %s252 = scalar_lea.vmem [#allocation3], %s251
        %s253 = smul.u32 2, %s22
        %p254 = scmp.lt.s32.totalorder %s21, 1
        %s255 = scalar_select %p254, %s21, 1
        %s256 = smul.addr %s255, 2
        %s257 = scalar_lea.vmem %s1, %s256
        %p258 = scmp.lt.s32.totalorder %s21, 1
        %s259 = scalar_select %p258, %s21, 1
        %s260 = smul.addr %s259, 2
        %s261 = scalar_lea.vmem %s2, %s260
        %s262 = smul.u32 2, %s22
        %v263 = vld [vmem:[%s224] sm:$0x3]
        %v264 = vld [vmem:[%s224 + $0x2] sm:$0x3]
        %vm265 = vcmask 123904
        %v266 = vsel %vm265, %v263, 0.0
        %267 = vadd.xlane.f32.xlu0 %v266
        %v268 = vpop.xlane.xlu0 %267
        %v269 = vsel %vm265, %v264, 0.0
        %270 = vadd.xlane.f32.xlu0 %v269
        %v271 = vpop.xlane.xlu0 %270
        %vm272 = vcmask 1041408
        %v273 = vsel %vm272, %v268, 0.0
        %v274 = vrot.slane %v273, 4
        %v275 = vadd.f32 %v273, %v274
        %v276 = vrot.slane %v275, 2
        %v277 = vadd.f32 %v275, %v276
        %v278 = vrot.slane %v277, 1
        %v279 = vadd.f32 %v277, %v278
        %v280 = vsel %vm272, %v271, 0.0
        %v281 = vrot.slane %v280, 4
        %v282 = vadd.f32 %v280, %v281
        %v283 = vrot.slane %v282, 2
        %v284 = vadd.f32 %v282, %v283
        %v285 = vrot.slane %v284, 1
        %v286 = vadd.f32 %v284, %v285
        %v287 = vmul.f32 %v279, 0.03125
        %v288 = vmul.f32 %v286, 0.03125
        %v289 = vsub.f32 %v263, %v287
        %v290 = vsub.f32 %v264, %v288
        %v291 = vmul.f32 %v289, %v289
        %v292 = vmul.f32 %v290, %v290
        %v293 = vsel %vm265, %v291, 0.0
        %294 = vadd.xlane.f32.xlu0 %v293
        %v295 = vpop.xlane.xlu0 %294
        %v296 = vsel %vm265, %v292, 0.0
        %297 = vadd.xlane.f32.xlu0 %v296
        %v298 = vpop.xlane.xlu0 %297
        %v299 = vsel %vm272, %v295, 0.0
        %v300 = vrot.slane %v299, 4
        %v301 = vadd.f32 %v299, %v300
        %v302 = vrot.slane %v301, 2
        %v303 = vadd.f32 %v301, %v302
        %v304 = vrot.slane %v303, 1
        %v305 = vadd.f32 %v303, %v304
        %v306 = vsel %vm272, %v298, 0.0
        %v307 = vrot.slane %v306, 4
        %v308 = vadd.f32 %v306, %v307
        %v309 = vrot.slane %v308, 2
        %v310 = vadd.f32 %v308, %v309
        %v311 = vrot.slane %v310, 1
        %v312 = vadd.f32 %v310, %v311
        %v313 = vmul.f32 %v305, 0.03125
        %v314 = vmul.f32 %v312, 0.03125
        %v315 = vadd.f32 %v313, 1e-05
        %v316 = vadd.f32 %v314, 1e-05
        %v317 = vrsqrt.pop %v315
        %v318 = vrsqrt.pop %v316
        %v319 = vld [vmem:[%s257] sm:$0x3]
        %v320 = vmul.f32 %v317, %v319
        %v321 = vmul.f32 %v318, %v319
        %323 = vset.pattern.permute.xlu0 0
        %324 = vperm.xlu0 %323, %v320
        %v325 = vpop.permute.xlu0 %324
        %328 = vset.pattern.permute.xlu0 0
        %329 = vperm.xlu0 %328, %v321
        %v330 = vpop.permute.xlu0 %329
        %v332 = vmul.f32 %v289, %v325
        %v333 = vmul.f32 %v290, %v330
        %v334 = vld [vmem:[%s261] sm:$0x3]
        %336 = vset.pattern.permute.xlu0 0
        %337 = vperm.xlu0 %336, %v334
        %v338 = vpop.permute.xlu0 %337
        %v340 = vadd.f32 %v332, %v338
        %v341 = vadd.f32 %v333, %v338
        %v342 = vmax.f32 %v340, 0.0
        %v343 = vmax.f32 %v341, 0.0
        %344 = vst.msk [vmem:[%s252] sm:$0x3] %vm265, %v342
        %345 = vst.msk [vmem:[%s252 + $0x2] sm:$0x3] %vm265, %v343
        %s346 = sand.u32 %s119, 1
        %s347 = scalar_lea.sflag [#allocation4], %s346
        %s348 = sand.u32 %s119, 1
        %s349 = smul.addr %s348, 4
        %s350 = scalar_lea.vmem [#allocation3], %s349
        // Predicated region
        $region67: #{tpu_custom_call.1} parent=61 // pred_check
          %p351 = pneg %p129
        $region68: #{tpu_custom_call.1} parent=61 // pred_check_branch
          %353 = sbr.rel (%p351) target = $region70
        $region69: #{tpu_custom_call.1} parent=61 // pred_region
          %s354 = smul.u32 2, %s22
          %s356 = ssub.s32 64, 64
          %357 = vsyncadd %s347, %s356
          %s358 = smul.addr %s354, 2
          %s359 = sadd.s32 %s21, %s358
          %s360 = smul.addr %s359, 32
          %s361 = scalar_lea.hbm %s3, %s360
          %s362 = sshll.u32 %s350, 4
          %s363 = int_to_ptr.vmem [resolvable:$true] %s362
          %368 = dma.vmem_to_hbm [thread:$0]  %s363, 64, %s361, %s347, 32, 64, 2
        $region70: #{tpu_custom_call.1} parent=61 // pred_fallthru
          _
      $region62: #{tpu_custom_call.1} parent=5 // pred_fallthru
        _
      %p369 = scmp.le.s32.totalorder 2, %s12
      // Predicated region
      $region71: #{tpu_custom_call.1} parent=5 // pred_check
        %p370 = pneg %p369
      $region72: #{tpu_custom_call.1} parent=5 // pred_check_branch
        %372 = sbr.rel (%p370) target = $region74
      $region73: #{tpu_custom_call.1} parent=5 // pred_region
        %s373 = ssub.s32 %s12, 2
        // Predicated region
        $region75: #{tpu_custom_call.1} parent=73 // pred_check
          %p374 = pneg %p135
        $region76: #{tpu_custom_call.1} parent=73 // pred_check_branch
          %376 = sbr.rel (%p374) target = $region78
        $region77: #{tpu_custom_call.1} parent=73 // pred_region
          %s377 = sand.u32 %s120, 1
          %s378 = scalar_lea.sflag [#allocation4], %s377
          %s379 = sand.u32 %s120, 1
          %s380 = smul.addr %s379, 4
          %s381 = scalar_lea.vmem [#allocation3], %s380
          %382 = dma.done %s378, 64
        $region78: #{tpu_custom_call.1} parent=73 // pred_fallthru
          _
      $region74: #{tpu_custom_call.1} parent=5 // pred_fallthru
        _
    $region6: #{tpu_custom_call.1} parent=1 // loop_footer
      %s16 = sadd.s32 1, %s12
    $region7: #{tpu_custom_call.1} parent=1 // loop_footer_branch
      %11 = sbr.rel target = $region3
    $region8: #{tpu_custom_call.1} parent=1 // loop_exit
      _
    %383 = vsyncpa [#allocation4], 1
    %s384 = scalar_lea.sflag [#allocation4], 1
    %385 = vsyncpa %s384, 1

</llo_original>
